<compile_context>
chip_gen: v5e
topology: v5e:2x2
jax: 0.10.0
libtpu: 0.0.40
codegen_flags: <defaults>
</compile_context>

<pallas_src>
import functools

import jax
import jax.numpy as jnp
from jax.experimental import pallas as pl
from jax.experimental.pallas import tpu as pltpu


def _cross_attn_kernel(x1_ref, x2_ref, x3_ref,
                       wq_ref, wk_ref, wv_ref, wo_ref, bo_ref,
                       o_ref, heads_ref,
                       *, tb, s1, s2, num_heads, k_dim, v_dim):
    # Refs are 2-D slabs with the batch tile folded into the row axis:
    #   x1_ref: (tb*s1, D1), x2_ref: (tb*s2, D2), x3_ref: (tb*s2, D3)
    x1 = x1_ref[...]
    x2 = x2_ref[...]
    x3 = x3_ref[...]

    # Read each weight ref exactly once — Python-unrolled loops get no CSE.
    # Fold the softmax scale into wq (D1 x HK elements) rather than into q
    # (tb*s1 x HK elements): strictly less VPU work per grid step.
    scale = 1.0 / (float(k_dim) ** 0.5)
    wq = wq_ref[...] * scale
    wk = wk_ref[...]
    wv = wv_ref[...]
    wo = wo_ref[...]
    bo = bo_ref[...]

    # Projections on the MXU.
    q = jnp.dot(x1, wq, preferred_element_type=jnp.float32)   # (tb*s1, H*K)
    k = jnp.dot(x2, wk, preferred_element_type=jnp.float32)   # (tb*s2, H*K)
    v = jnp.dot(x3, wv, preferred_element_type=jnp.float32)   # (tb*s2, H*V)

    # Split the batch tile back out of the row axis (leading-dim split — a
    # layout-preserving reshape when s1/s2 are multiples of the 8-row sublane
    # tile, which they are here).
    q3 = q.reshape(tb, s1, num_heads * k_dim)
    k3 = k.reshape(tb, s2, num_heads * k_dim)
    v3 = v.reshape(tb, s2, num_heads * v_dim)

    for h in range(num_heads):  # static, small head loop
        qh = q3[:, :, h * k_dim:(h + 1) * k_dim]       # (tb, s1, K)
        kh = k3[:, :, h * k_dim:(h + 1) * k_dim]       # (tb, s2, K)
        vh = v3[:, :, h * v_dim:(h + 1) * v_dim]       # (tb, s2, V)

        # Batched, transpose-free attention logits (contract last axes).
        s = jnp.einsum('bqk,bsk->bqs', qh, kh,
                       preferred_element_type=jnp.float32)    # (tb, s1, s2)

        # Numerically stable softmax with deferred normalization: scale the
        # (tb, s1, V) head output by 1/denom instead of the (tb, s1, s2)
        # probability matrix.
        s = s - jnp.max(s, axis=-1, keepdims=True)
        p = jnp.exp(s)
        denom = jnp.sum(p, axis=-1, keepdims=True)             # (tb, s1, 1)

        oh = jnp.einsum('bqs,bsv->bqv', p, vh,
                        preferred_element_type=jnp.float32)    # (tb, s1, V)
        # Exact reciprocal keeps f32-level agreement with the reference;
        # approx=True would push this onto the otherwise-idle EUP slot.
        oh = oh * pl.reciprocal(denom, approx=False)

        # Stage the head output at its lane offset; a single fused output
        # projection (contraction depth H*V) follows instead of H shallow
        # matmuls + H-1 full-slab accumulator adds.
        heads_ref[:, h * v_dim:(h + 1) * v_dim] = oh.reshape(tb * s1, v_dim)

    out = jnp.dot(heads_ref[...], wo, preferred_element_type=jnp.float32) + bo
    o_ref[...] = out.astype(o_ref.dtype)


def _pick_batch_tile(B, S1, S2, D1, D2, D3, HK, HV, itemsize, budget_bytes):
    """Largest divisor of B whose working set fits the VMEM budget, capped so
    the grid has at least 2 steps whenever B >= 2 (pipeline overlap + v7x
    megacore sharding)."""
    # Grid-invariant weight blocks (Pallas still allocates two buffers each).
    w_bytes = 2 * (D1 * HK + D2 * HK + D3 * HV + HV * D1 + D1) * itemsize

    def fits(tb):
        io = 2 * tb * (S1 * D1 + S2 * (D2 + D3) + S1 * D1) * itemsize  # dbl-buf in/out
        qkv = tb * (S1 * HK + S2 * (HK + HV)) * 4                      # f32 projections
        logits = 2 * tb * S1 * S2 * 4                                  # one head's s + exp(s)
        heads = tb * S1 * (HV + D1) * 4                                # head scratch + out slab
        need = w_bytes + io + qkv + logits + heads
        return need * 3 // 2 <= budget_bytes                           # 1.5x headroom

    divisors = [d for d in range(1, B + 1) if B % d == 0]
    fitting = [d for d in divisors if fits(d)]
    tb = max(fitting) if fitting else 1
    if tb >= B and B > 1:
        tb = max(d for d in divisors if d <= B // 2)
    return tb


def cross_attention(x1, x2, x3, wq, wk, wv, wo, bo, *,
                    num_heads, k_dim, v_dim, batch_tile=None,
                    vmem_budget_bytes=32 * 1024 * 1024,
                    vmem_limit_bytes=48 * 1024 * 1024):
    B, S1, D1 = x1.shape
    _, S2, D2 = x2.shape
    _, S3, D3 = x3.shape
    assert S2 == S3, "CrossAttention requires seq_len2 == seq_len3 (attn @ v2)"
    HK = num_heads * k_dim
    HV = num_heads * v_dim
    assert wq.shape == (D1, HK) and wk.shape == (D2, HK)
    assert wv.shape == (D3, HV) and wo.shape == (HV, D1) and bo.shape == (D1,)

    if batch_tile is None:
        tb = _pick_batch_tile(B, S1, S2, D1, D2, D3, HK, HV,
                              x1.dtype.itemsize, vmem_budget_bytes)
    else:
        tb = batch_tile
    assert B % tb == 0, "batch_tile must divide batch"

    # Fold batch into the row axis so each grid step is one fat contiguous slab
    # (contiguous reshape — free in the wrapper).
    x1f = x1.reshape(B * S1, D1)
    x2f = x2.reshape(B * S2, D2)
    x3f = x3.reshape(B * S3, D3)
    bo2 = bo.reshape(1, D1)

    kernel = functools.partial(_cross_attn_kernel, tb=tb, s1=S1, s2=S2,
                               num_heads=num_heads, k_dim=k_dim, v_dim=v_dim)

    out = pl.pallas_call(
        kernel,
        out_shape=jax.ShapeDtypeStruct((B * S1, D1), x1.dtype),
        grid_spec=pltpu.PrefetchScalarGridSpec(
            num_scalar_prefetch=0,
            grid=(B // tb,),
            in_specs=[
                pl.BlockSpec((tb * S1, D1), lambda i: (i, 0)),
                pl.BlockSpec((tb * S2, D2), lambda i: (i, 0)),
                pl.BlockSpec((tb * S3, D3), lambda i: (i, 0)),
                pl.BlockSpec((D1, HK), lambda i: (0, 0)),
                pl.BlockSpec((D2, HK), lambda i: (0, 0)),
                pl.BlockSpec((D3, HV), lambda i: (0, 0)),
                pl.BlockSpec((HV, D1), lambda i: (0, 0)),
                pl.BlockSpec((1, D1), lambda i: (0, 0)),
            ],
            out_specs=pl.BlockSpec((tb * S1, D1), lambda i: (i, 0)),
            scratch_shapes=[pltpu.VMEM((tb * S1, HV), jnp.float32)],
        ),
        compiler_params=pltpu.CompilerParams(
            dimension_semantics=("parallel",),
            vmem_limit_bytes=vmem_limit_bytes),
    )(x1f, x2f, x3f, wq, wk, wv, wo, bo2)
    return out.reshape(B, S1, D1)


def _reference(x1, x2, x3, wq, wk, wv, wo, bo, *, num_heads, k_dim, v_dim):
    B, S1, D1 = x1.shape
    S2 = x2.shape[1]
    q = (x1 @ wq).reshape(B, S1, num_heads, k_dim).transpose(0, 2, 1, 3)
    k = (x2 @ wk).reshape(B, S2, num_heads, k_dim).transpose(0, 2, 3, 1)
    v = (x3 @ wv).reshape(B, S2, num_heads, v_dim).transpose(0, 2, 1, 3)
    attn = jnp.matmul(q, k) / (k_dim ** 0.5)
    attn = jax.nn.softmax(attn, axis=-1)
    out = jnp.matmul(attn, v).transpose(0, 2, 1, 3).reshape(B, S1, num_heads * v_dim)
    return out @ wo + bo


if __name__ == "__main__":
    # Small deterministic config consistent with the module.
    B = 2
    S1, S2, S3 = 8, 8, 8          # seq_len2 must equal seq_len3 (matmul attn @ v2)
    in_dim1, in_dim2, in_dim3 = 32, 32, 32
    k_dim, v_dim, num_heads = 16, 16, 4

    key = jax.random.PRNGKey(0)
    keys = jax.random.split(key, 8)
    x1 = jax.random.normal(keys[0], (B, S1, in_dim1), dtype=jnp.float32)
    x2 = jax.random.normal(keys[1], (B, S2, in_dim2), dtype=jnp.float32)
    x3 = jax.random.normal(keys[2], (B, S3, in_dim3), dtype=jnp.float32)

    # Deterministic parameter init (stored as (in, out) = torch Linear weight transposed).
    wq = 0.05 * jax.random.normal(keys[3], (in_dim1, k_dim * num_heads), dtype=jnp.float32)
    wk = 0.05 * jax.random.normal(keys[4], (in_dim2, k_dim * num_heads), dtype=jnp.float32)
    wv = 0.05 * jax.random.normal(keys[5], (in_dim3, v_dim * num_heads), dtype=jnp.float32)
    wo = 0.05 * jax.random.normal(keys[6], (v_dim * num_heads, in_dim1), dtype=jnp.float32)
    bo = 0.05 * jax.random.normal(keys[7], (in_dim1,), dtype=jnp.float32)

    out = cross_attention(x1, x2, x3, wq, wk, wv, wo, bo,
                          num_heads=num_heads, k_dim=k_dim, v_dim=v_dim)
    out = jax.block_until_ready(out)

    ref = _reference(x1, x2, x3, wq, wk, wv, wo, bo,
                     num_heads=num_heads, k_dim=k_dim, v_dim=v_dim)
    assert out.shape == (B, S1, in_dim1)
    assert jnp.allclose(out, ref, atol=1e-4, rtol=1e-4), "mismatch vs reference"

    print("KERNEL_OK")
</pallas_src>

<mosaic_0001>
module attributes {stable_mosaic.version = 11 : i64} {
  func.func @_cross_attn_kernel(%arg0: i32, %arg1: memref<8x32xf32, #tpu.memory_space<vmem>>, %arg2: memref<8x32xf32, #tpu.memory_space<vmem>>, %arg3: memref<8x32xf32, #tpu.memory_space<vmem>>, %arg4: memref<32x64xf32, #tpu.memory_space<vmem>>, %arg5: memref<32x64xf32, #tpu.memory_space<vmem>>, %arg6: memref<32x64xf32, #tpu.memory_space<vmem>>, %arg7: memref<64x32xf32, #tpu.memory_space<vmem>>, %arg8: memref<1x32xf32, #tpu.memory_space<vmem>>, %arg9: memref<8x32xf32, #tpu.memory_space<vmem>>, %arg10: memref<8x64xf32, #tpu.memory_space<vmem>>) attributes {dimension_semantics = [#tpu.dimension_semantics<parallel>], iteration_bounds = array<i64: 2>, scalar_prefetch = 0 : i64, scratch_operands = 1 : i64, tpu.core_type = #tpu.core_type<tc>, window_params = [{transform_indices = @transform_0, window_bounds = array<i64: 8, 32>}, {transform_indices = @transform_1, window_bounds = array<i64: 8, 32>}, {transform_indices = @transform_2, window_bounds = array<i64: 8, 32>}, {pipeline_mode = #tpu.pipeline_mode<synchronous>, transform_indices = @transform_3, window_bounds = array<i64: 32, 64>}, {pipeline_mode = #tpu.pipeline_mode<synchronous>, transform_indices = @transform_4, window_bounds = array<i64: 32, 64>}, {pipeline_mode = #tpu.pipeline_mode<synchronous>, transform_indices = @transform_5, window_bounds = array<i64: 32, 64>}, {pipeline_mode = #tpu.pipeline_mode<synchronous>, transform_indices = @transform_6, window_bounds = array<i64: 64, 32>}, {pipeline_mode = #tpu.pipeline_mode<synchronous>, transform_indices = @transform_7, window_bounds = array<i64: 1, 32>}, {transform_indices = @transform_8, window_bounds = array<i64: 8, 32>}]} {
    %c0 = arith.constant 0 : index
    %c0_0 = arith.constant 0 : index
    %0 = vector.load %arg1[%c0, %c0_0] : memref<8x32xf32, #tpu.memory_space<vmem>>, vector<8x32xf32>
    %c0_1 = arith.constant 0 : index
    %c0_2 = arith.constant 0 : index
    %1 = vector.load %arg2[%c0_1, %c0_2] : memref<8x32xf32, #tpu.memory_space<vmem>>, vector<8x32xf32>
    %c0_3 = arith.constant 0 : index
    %c0_4 = arith.constant 0 : index
    %2 = vector.load %arg3[%c0_3, %c0_4] : memref<8x32xf32, #tpu.memory_space<vmem>>, vector<8x32xf32>
    %c0_5 = arith.constant 0 : index
    %c0_6 = arith.constant 0 : index
    %3 = vector.load %arg4[%c0_5, %c0_6] : memref<32x64xf32, #tpu.memory_space<vmem>>, vector<32x64xf32>
    %cst = arith.constant 2.500000e-01 : f32
    %4 = vector.broadcast %cst : f32 to vector<32x64xf32>
    %5 = arith.mulf %3, %4 : vector<32x64xf32>
    %c0_7 = arith.constant 0 : index
    %c0_8 = arith.constant 0 : index
    %6 = vector.load %arg5[%c0_7, %c0_8] : memref<32x64xf32, #tpu.memory_space<vmem>>, vector<32x64xf32>
    %c0_9 = arith.constant 0 : index
    %c0_10 = arith.constant 0 : index
    %7 = vector.load %arg6[%c0_9, %c0_10] : memref<32x64xf32, #tpu.memory_space<vmem>>, vector<32x64xf32>
    %c0_11 = arith.constant 0 : index
    %c0_12 = arith.constant 0 : index
    %8 = vector.load %arg7[%c0_11, %c0_12] : memref<64x32xf32, #tpu.memory_space<vmem>>, vector<64x32xf32>
    %c0_13 = arith.constant 0 : index
    %c0_14 = arith.constant 0 : index
    %9 = vector.load %arg8[%c0_13, %c0_14] : memref<1x32xf32, #tpu.memory_space<vmem>>, vector<1x32xf32>
    %cst_15 = arith.constant dense<0.000000e+00> : vector<8x64xf32>
    %10 = tpu.matmul %0, %5, %cst_15 {dimension_numbers = #tpu.dot_dimension_numbers<[1], [0], [0], [1], [0, 0, 1, 1], [], []>} : vector<8x32xf32>, vector<32x64xf32>, vector<8x64xf32> -> vector<8x64xf32>
    %cst_16 = arith.constant dense<0.000000e+00> : vector<8x64xf32>
    %11 = tpu.matmul %1, %6, %cst_16 {dimension_numbers = #tpu.dot_dimension_numbers<[1], [0], [0], [1], [0, 0, 1, 1], [], []>} : vector<8x32xf32>, vector<32x64xf32>, vector<8x64xf32> -> vector<8x64xf32>
    %cst_17 = arith.constant dense<0.000000e+00> : vector<8x64xf32>
    %12 = tpu.matmul %2, %7, %cst_17 {dimension_numbers = #tpu.dot_dimension_numbers<[1], [0], [0], [1], [0, 0, 1, 1], [], []>} : vector<8x32xf32>, vector<32x64xf32>, vector<8x64xf32> -> vector<8x64xf32>
    %13 = vector.shape_cast %10 : vector<8x64xf32> to vector<1x8x64xf32>
    %14 = vector.shape_cast %11 : vector<8x64xf32> to vector<1x8x64xf32>
    %15 = vector.shape_cast %12 : vector<8x64xf32> to vector<1x8x64xf32>
    %16 = vector.extract_strided_slice %13 {offsets = [0, 0, 0], sizes = [1, 8, 16], strides = [1, 1, 1]} : vector<1x8x64xf32> to vector<1x8x16xf32>
    %17 = vector.extract_strided_slice %14 {offsets = [0, 0, 0], sizes = [1, 8, 16], strides = [1, 1, 1]} : vector<1x8x64xf32> to vector<1x8x16xf32>
    %18 = vector.extract_strided_slice %15 {offsets = [0, 0, 0], sizes = [1, 8, 16], strides = [1, 1, 1]} : vector<1x8x64xf32> to vector<1x8x16xf32>
    "tpu.trace_start"() <{level = 10 : i32, message = "bqk,bsk->bqs"}> : () -> ()
    %cst_18 = arith.constant dense<0.000000e+00> : vector<1x8x8xf32>
    %19 = tpu.matmul %16, %17, %cst_18 {dimension_numbers = #tpu.dot_dimension_numbers<[2], [2], [1], [1], [0, 0, 0, 1, 1, 1], [0], [0]>} : vector<1x8x16xf32>, vector<1x8x16xf32>, vector<1x8x8xf32> -> vector<1x8x8xf32>
    "tpu.trace_stop"() : () -> ()
    %cst_19 = arith.constant dense<0xFF800000> : vector<1x8xf32>
    %20 = vector.multi_reduction <maximumf>, %19, %cst_19 [2] : vector<1x8x8xf32> to vector<1x8xf32>
    %21 = vector.shape_cast %20 : vector<1x8xf32> to vector<1x8x1xf32>
    %22 = vector.broadcast %21 : vector<1x8x1xf32> to vector<1x8x8xf32>
    %23 = arith.subf %19, %22 : vector<1x8x8xf32>
    %24 = math.exp %23 : vector<1x8x8xf32>
    %cst_20 = arith.constant dense<0.000000e+00> : vector<1x8xf32>
    %25 = vector.multi_reduction <add>, %24, %cst_20 [2] : vector<1x8x8xf32> to vector<1x8xf32>
    %26 = vector.shape_cast %25 : vector<1x8xf32> to vector<1x8x1xf32>
    "tpu.trace_start"() <{level = 10 : i32, message = "bqs,bsv->bqv"}> : () -> ()
    %cst_21 = arith.constant dense<0.000000e+00> : vector<1x8x16xf32>
    %27 = tpu.matmul %24, %18, %cst_21 {dimension_numbers = #tpu.dot_dimension_numbers<[2], [1], [1], [2], [0, 0, 0, 1, 1, 2], [0], [0]>} : vector<1x8x8xf32>, vector<1x8x16xf32>, vector<1x8x16xf32> -> vector<1x8x16xf32>
    "tpu.trace_stop"() : () -> ()
    %28 = tpu.reciprocal %26 : vector<1x8x1xf32> -> vector<1x8x1xf32>
    %29 = vector.broadcast %28 : vector<1x8x1xf32> to vector<1x8x16xf32>
    %30 = arith.mulf %27, %29 : vector<1x8x16xf32>
    %31 = vector.shape_cast %30 : vector<1x8x16xf32> to vector<8x16xf32>
    %c0_22 = arith.constant 0 : index
    %c0_23 = arith.constant 0 : index
    %32 = vector.load %arg10[%c0_22, %c0_23] : memref<8x64xf32, #tpu.memory_space<vmem>>, vector<8x16xf32>
    tpu.vector_store %arg10[%c0_22, %c0_23], %31 {strides = array<i32>} : memref<8x64xf32, #tpu.memory_space<vmem>>, vector<8x16xf32>,
    %33 = vector.extract_strided_slice %13 {offsets = [0, 0, 16], sizes = [1, 8, 16], strides = [1, 1, 1]} : vector<1x8x64xf32> to vector<1x8x16xf32>
    %34 = vector.extract_strided_slice %14 {offsets = [0, 0, 16], sizes = [1, 8, 16], strides = [1, 1, 1]} : vector<1x8x64xf32> to vector<1x8x16xf32>
    %35 = vector.extract_strided_slice %15 {offsets = [0, 0, 16], sizes = [1, 8, 16], strides = [1, 1, 1]} : vector<1x8x64xf32> to vector<1x8x16xf32>
    "tpu.trace_start"() <{level = 10 : i32, message = "bqk,bsk->bqs"}> : () -> ()
    %cst_24 = arith.constant dense<0.000000e+00> : vector<1x8x8xf32>
    %36 = tpu.matmul %33, %34, %cst_24 {dimension_numbers = #tpu.dot_dimension_numbers<[2], [2], [1], [1], [0, 0, 0, 1, 1, 1], [0], [0]>} : vector<1x8x16xf32>, vector<1x8x16xf32>, vector<1x8x8xf32> -> vector<1x8x8xf32>
    "tpu.trace_stop"() : () -> ()
    %cst_25 = arith.constant dense<0xFF800000> : vector<1x8xf32>
    %37 = vector.multi_reduction <maximumf>, %36, %cst_25 [2] : vector<1x8x8xf32> to vector<1x8xf32>
    %38 = vector.shape_cast %37 : vector<1x8xf32> to vector<1x8x1xf32>
    %39 = vector.broadcast %38 : vector<1x8x1xf32> to vector<1x8x8xf32>
    %40 = arith.subf %36, %39 : vector<1x8x8xf32>
    %41 = math.exp %40 : vector<1x8x8xf32>
    %cst_26 = arith.constant dense<0.000000e+00> : vector<1x8xf32>
    %42 = vector.multi_reduction <add>, %41, %cst_26 [2] : vector<1x8x8xf32> to vector<1x8xf32>
    %43 = vector.shape_cast %42 : vector<1x8xf32> to vector<1x8x1xf32>
    "tpu.trace_start"() <{level = 10 : i32, message = "bqs,bsv->bqv"}> : () -> ()
    %cst_27 = arith.constant dense<0.000000e+00> : vector<1x8x16xf32>
    %44 = tpu.matmul %41, %35, %cst_27 {dimension_numbers = #tpu.dot_dimension_numbers<[2], [1], [1], [2], [0, 0, 0, 1, 1, 2], [0], [0]>} : vector<1x8x8xf32>, vector<1x8x16xf32>, vector<1x8x16xf32> -> vector<1x8x16xf32>
    "tpu.trace_stop"() : () -> ()
    %45 = tpu.reciprocal %43 : vector<1x8x1xf32> -> vector<1x8x1xf32>
    %46 = vector.broadcast %45 : vector<1x8x1xf32> to vector<1x8x16xf32>
    %47 = arith.mulf %44, %46 : vector<1x8x16xf32>
    %48 = vector.shape_cast %47 : vector<1x8x16xf32> to vector<8x16xf32>
    %c0_28 = arith.constant 0 : index
    %c16 = arith.constant 16 : index
    %49 = vector.load %arg10[%c0_28, %c16] : memref<8x64xf32, #tpu.memory_space<vmem>>, vector<8x16xf32>
    tpu.vector_store %arg10[%c0_28, %c16], %48 {strides = array<i32>} : memref<8x64xf32, #tpu.memory_space<vmem>>, vector<8x16xf32>,
    %50 = vector.extract_strided_slice %13 {offsets = [0, 0, 32], sizes = [1, 8, 16], strides = [1, 1, 1]} : vector<1x8x64xf32> to vector<1x8x16xf32>
    %51 = vector.extract_strided_slice %14 {offsets = [0, 0, 32], sizes = [1, 8, 16], strides = [1, 1, 1]} : vector<1x8x64xf32> to vector<1x8x16xf32>
    %52 = vector.extract_strided_slice %15 {offsets = [0, 0, 32], sizes = [1, 8, 16], strides = [1, 1, 1]} : vector<1x8x64xf32> to vector<1x8x16xf32>
    "tpu.trace_start"() <{level = 10 : i32, message = "bqk,bsk->bqs"}> : () -> ()
    %cst_29 = arith.constant dense<0.000000e+00> : vector<1x8x8xf32>
    %53 = tpu.matmul %50, %51, %cst_29 {dimension_numbers = #tpu.dot_dimension_numbers<[2], [2], [1], [1], [0, 0, 0, 1, 1, 1], [0], [0]>} : vector<1x8x16xf32>, vector<1x8x16xf32>, vector<1x8x8xf32> -> vector<1x8x8xf32>
    "tpu.trace_stop"() : () -> ()
    %cst_30 = arith.constant dense<0xFF800000> : vector<1x8xf32>
    %54 = vector.multi_reduction <maximumf>, %53, %cst_30 [2] : vector<1x8x8xf32> to vector<1x8xf32>
    %55 = vector.shape_cast %54 : vector<1x8xf32> to vector<1x8x1xf32>
    %56 = vector.broadcast %55 : vector<1x8x1xf32> to vector<1x8x8xf32>
    %57 = arith.subf %53, %56 : vector<1x8x8xf32>
    %58 = math.exp %57 : vector<1x8x8xf32>
    %cst_31 = arith.constant dense<0.000000e+00> : vector<1x8xf32>
    %59 = vector.multi_reduction <add>, %58, %cst_31 [2] : vector<1x8x8xf32> to vector<1x8xf32>
    %60 = vector.shape_cast %59 : vector<1x8xf32> to vector<1x8x1xf32>
    "tpu.trace_start"() <{level = 10 : i32, message = "bqs,bsv->bqv"}> : () -> ()
    %cst_32 = arith.constant dense<0.000000e+00> : vector<1x8x16xf32>
    %61 = tpu.matmul %58, %52, %cst_32 {dimension_numbers = #tpu.dot_dimension_numbers<[2], [1], [1], [2], [0, 0, 0, 1, 1, 2], [0], [0]>} : vector<1x8x8xf32>, vector<1x8x16xf32>, vector<1x8x16xf32> -> vector<1x8x16xf32>
    "tpu.trace_stop"() : () -> ()
    %62 = tpu.reciprocal %60 : vector<1x8x1xf32> -> vector<1x8x1xf32>
    %63 = vector.broadcast %62 : vector<1x8x1xf32> to vector<1x8x16xf32>
    %64 = arith.mulf %61, %63 : vector<1x8x16xf32>
    %65 = vector.shape_cast %64 : vector<1x8x16xf32> to vector<8x16xf32>
    %c0_33 = arith.constant 0 : index
    %c32 = arith.constant 32 : index
    %66 = vector.load %arg10[%c0_33, %c32] : memref<8x64xf32, #tpu.memory_space<vmem>>, vector<8x16xf32>
    tpu.vector_store %arg10[%c0_33, %c32], %65 {strides = array<i32>} : memref<8x64xf32, #tpu.memory_space<vmem>>, vector<8x16xf32>,
    %67 = vector.extract_strided_slice %13 {offsets = [0, 0, 48], sizes = [1, 8, 16], strides = [1, 1, 1]} : vector<1x8x64xf32> to vector<1x8x16xf32>
    %68 = vector.extract_strided_slice %14 {offsets = [0, 0, 48], sizes = [1, 8, 16], strides = [1, 1, 1]} : vector<1x8x64xf32> to vector<1x8x16xf32>
    %69 = vector.extract_strided_slice %15 {offsets = [0, 0, 48], sizes = [1, 8, 16], strides = [1, 1, 1]} : vector<1x8x64xf32> to vector<1x8x16xf32>
    "tpu.trace_start"() <{level = 10 : i32, message = "bqk,bsk->bqs"}> : () -> ()
    %cst_34 = arith.constant dense<0.000000e+00> : vector<1x8x8xf32>
    %70 = tpu.matmul %67, %68, %cst_34 {dimension_numbers = #tpu.dot_dimension_numbers<[2], [2], [1], [1], [0, 0, 0, 1, 1, 1], [0], [0]>} : vector<1x8x16xf32>, vector<1x8x16xf32>, vector<1x8x8xf32> -> vector<1x8x8xf32>
    "tpu.trace_stop"() : () -> ()
    %cst_35 = arith.constant dense<0xFF800000> : vector<1x8xf32>
    %71 = vector.multi_reduction <maximumf>, %70, %cst_35 [2] : vector<1x8x8xf32> to vector<1x8xf32>
    %72 = vector.shape_cast %71 : vector<1x8xf32> to vector<1x8x1xf32>
    %73 = vector.broadcast %72 : vector<1x8x1xf32> to vector<1x8x8xf32>
    %74 = arith.subf %70, %73 : vector<1x8x8xf32>
    %75 = math.exp %74 : vector<1x8x8xf32>
    %cst_36 = arith.constant dense<0.000000e+00> : vector<1x8xf32>
    %76 = vector.multi_reduction <add>, %75, %cst_36 [2] : vector<1x8x8xf32> to vector<1x8xf32>
    %77 = vector.shape_cast %76 : vector<1x8xf32> to vector<1x8x1xf32>
    "tpu.trace_start"() <{level = 10 : i32, message = "bqs,bsv->bqv"}> : () -> ()
    %cst_37 = arith.constant dense<0.000000e+00> : vector<1x8x16xf32>
    %78 = tpu.matmul %75, %69, %cst_37 {dimension_numbers = #tpu.dot_dimension_numbers<[2], [1], [1], [2], [0, 0, 0, 1, 1, 2], [0], [0]>} : vector<1x8x8xf32>, vector<1x8x16xf32>, vector<1x8x16xf32> -> vector<1x8x16xf32>
    "tpu.trace_stop"() : () -> ()
    %79 = tpu.reciprocal %77 : vector<1x8x1xf32> -> vector<1x8x1xf32>
    %80 = vector.broadcast %79 : vector<1x8x1xf32> to vector<1x8x16xf32>
    %81 = arith.mulf %78, %80 : vector<1x8x16xf32>
    %82 = vector.shape_cast %81 : vector<1x8x16xf32> to vector<8x16xf32>
    %c0_38 = arith.constant 0 : index
    %c48 = arith.constant 48 : index
    %83 = vector.load %arg10[%c0_38, %c48] : memref<8x64xf32, #tpu.memory_space<vmem>>, vector<8x16xf32>
    tpu.vector_store %arg10[%c0_38, %c48], %82 {strides = array<i32>} : memref<8x64xf32, #tpu.memory_space<vmem>>, vector<8x16xf32>,
    %c0_39 = arith.constant 0 : index
    %c0_40 = arith.constant 0 : index
    %84 = vector.load %arg10[%c0_39, %c0_40] : memref<8x64xf32, #tpu.memory_space<vmem>>, vector<8x64xf32>
    %cst_41 = arith.constant dense<0.000000e+00> : vector<8x32xf32>
    %85 = tpu.matmul %84, %8, %cst_41 {dimension_numbers = #tpu.dot_dimension_numbers<[1], [0], [0], [1], [0, 0, 1, 1], [], []>} : vector<8x64xf32>, vector<64x32xf32>, vector<8x32xf32> -> vector<8x32xf32>
    %86 = vector.broadcast %9 : vector<1x32xf32> to vector<8x32xf32>
    %87 = arith.addf %85, %86 : vector<8x32xf32>
    %c0_42 = arith.constant 0 : index
    %c0_43 = arith.constant 0 : index
    %88 = vector.load %arg9[%c0_42, %c0_43] : memref<8x32xf32, #tpu.memory_space<vmem>>, vector<8x32xf32>
    tpu.vector_store %arg9[%c0_42, %c0_43], %87 {strides = array<i32>} : memref<8x32xf32, #tpu.memory_space<vmem>>, vector<8x32xf32>,
    return
  }
  func.func @transform_0(%arg0: i32) -> (i32, i32) {
    %c0_i32 = arith.constant 0 : i32
    %c0_i32_0 = arith.constant 0 : i32
    return %arg0, %c0_i32 : i32, i32
  }
  func.func @transform_1(%arg0: i32) -> (i32, i32) {
    %c0_i32 = arith.constant 0 : i32
    %c0_i32_0 = arith.constant 0 : i32
    return %arg0, %c0_i32 : i32, i32
  }
  func.func @transform_2(%arg0: i32) -> (i32, i32) {
    %c0_i32 = arith.constant 0 : i32
    %c0_i32_0 = arith.constant 0 : i32
    return %arg0, %c0_i32 : i32, i32
  }
  func.func @transform_3(%arg0: i32) -> (i32, i32) {
    %c0_i32 = arith.constant 0 : i32
    %c0_i32_0 = arith.constant 0 : i32
    %c0_i32_1 = arith.constant 0 : i32
    return %c0_i32, %c0_i32_0 : i32, i32
  }
  func.func @transform_4(%arg0: i32) -> (i32, i32) {
    %c0_i32 = arith.constant 0 : i32
    %c0_i32_0 = arith.constant 0 : i32
    %c0_i32_1 = arith.constant 0 : i32
    return %c0_i32, %c0_i32_0 : i32, i32
  }
  func.func @transform_5(%arg0: i32) -> (i32, i32) {
    %c0_i32 = arith.constant 0 : i32
    %c0_i32_0 = arith.constant 0 : i32
    %c0_i32_1 = arith.constant 0 : i32
    return %c0_i32, %c0_i32_0 : i32, i32
  }
  func.func @transform_6(%arg0: i32) -> (i32, i32) {
    %c0_i32 = arith.constant 0 : i32
    %c0_i32_0 = arith.constant 0 : i32
    %c0_i32_1 = arith.constant 0 : i32
    return %c0_i32, %c0_i32_0 : i32, i32
  }
  func.func @transform_7(%arg0: i32) -> (i32, i32) {
    %c0_i32 = arith.constant 0 : i32
    %c0_i32_0 = arith.constant 0 : i32
    %c0_i32_1 = arith.constant 0 : i32
    return %c0_i32, %c0_i32_0 : i32, i32
  }
  func.func @transform_8(%arg0: i32) -> (i32, i32) {
    %c0_i32 = arith.constant 0 : i32
    %c0_i32_0 = arith.constant 0 : i32
    return %arg0, %c0_i32 : i32, i32
  }
}

</mosaic_0001>

<llo_original>
// kernel: tpu_custom_call.1
$region0: #{tpu_custom_call.1}
  #allocation0 [shape = 'u32[]', space=smem, size = 0x4, offset = 0x4, fixed_abs, tag = 'smem constant byte address 0x4 - core index']
  #allocation1 [shape = 'u32[72,128]{1,0:T(1,128)}', space=vmem, size = 0x9000, scoped, tag = 'internal scratch']
  #allocation2 [shape = 'f32[8,64]{1,0:T(8,128)}', space=vmem, size = 0x1000, scoped, tag = 'scratch operand']
  %s0 = inlined_call_operand.hbm [shape: f32[16,32], index: 0, kind: input, shape index: {}]
  %s1 = inlined_call_operand.hbm [shape: f32[16,32], index: 1, kind: input, shape index: {}]
  %s2 = inlined_call_operand.hbm [shape: f32[16,32], index: 2, kind: input, shape index: {}]
  %s3 = inlined_call_operand.vmem [shape: f32[32,64], index: 3, kind: input, shape index: {}]
  %s4 = inlined_call_operand.vmem [shape: f32[32,64], index: 4, kind: input, shape index: {}]
  %s5 = inlined_call_operand.vmem [shape: f32[32,64], index: 5, kind: input, shape index: {}]
  %s6 = inlined_call_operand.vmem [shape: f32[64,32], index: 6, kind: input, shape index: {}]
  %s7 = inlined_call_operand.vmem [shape: f32[1,32], index: 7, kind: input, shape index: {}]
  %s8 = inlined_call_operand.hbm [shape: f32[16,32], index: 8, kind: output, shape index: {}]
  %s9 = sld [smem:[#allocation0]]
  $region77: #{tpu_custom_call.1} parent=0
    _
  %s11 = ssub.s32 1, %s9
  %s12 = scalar_select 0, %s11, %s9
  $region1: #{tpu_custom_call.1} parent=0
    #allocation3 [shape = 'u8[8192]{0}', space=vmem, size = 0x2000, scoped, tag = 'input window, operand 0']
    #allocation4 [shape = 's32[2]{0}', space=sflag, size = 0x8, scoped, tag = 'scoped memory for tpu_custom_call.1']
    #allocation5 [shape = 's32[2]{0}', space=sflag, size = 0x8, scoped, tag = 'scoped memory for tpu_custom_call.1']
    #allocation6 [shape = 'u8[8192]{0}', space=vmem, size = 0x2000, scoped, tag = 'input window, operand 1']
    #allocation7 [shape = 's32[2]{0}', space=sflag, size = 0x8, scoped, tag = 'scoped memory for tpu_custom_call.1']
    #allocation8 [shape = 'u8[8192]{0}', space=vmem, size = 0x2000, scoped, tag = 'input window, operand 2']
    #allocation9 [shape = 'u8[8192]{0}', space=vmem, size = 0x2000, scoped, tag = 'output window, operand 0']
    %13 = vsyncpa [#allocation4], 0
    %s14 = scalar_lea.sflag [#allocation4], 1
    %15 = vsyncpa %s14, 0
    %16 = vsyncpa [#allocation7], 0
    %s17 = scalar_lea.sflag [#allocation7], 1
    %18 = vsyncpa %s17, 0
    %19 = vsyncpa [#allocation5], 0
    %s20 = scalar_lea.sflag [#allocation5], 1
    %21 = vsyncpa %s20, 0
    loop: start=0, step=1, limit=4
    $region2: #{tpu_custom_call.1} parent=1 // loop_pre_header
      _
    $region3: #{tpu_custom_call.1} parent=1 // loop_header
      %s23 = sphi 0, %s27
      %p24 = scmp.ge.s32.totalorder %s23, 4
      %s33 = sphi 0, %s35
      %s36 = sphi 0, %s33
      %s37 = sphi 0, %s36
      %s53 = sphi 0, %s37
      %s59 = sphi 0, %s61
      %s62 = sphi 0, %s59
      %s63 = sphi 0, %s62
      %s79 = sphi 0, %s63
      %s85 = sphi 0, %s87
      %s88 = sphi 0, %s85
      %s89 = sphi 0, %s88
      %s105 = sphi 0, %s89
      %s109 = sphi 0, %s109
      %s111 = sphi 0, %s109
      %s112 = sphi 0, %s111
      %s126 = sphi 0, %s112
      %s130 = sphi 0, %s130
      %s132 = sphi 0, %s130
      %s133 = sphi 0, %s132
      %s147 = sphi 0, %s133
      %s151 = sphi 0, %s151
      %s153 = sphi 0, %s151
      %s154 = sphi 0, %s153
      %s168 = sphi 0, %s154
      %s172 = sphi 0, %s172
      %s174 = sphi 0, %s172
      %s175 = sphi 0, %s174
      %s189 = sphi 0, %s175
      %s193 = sphi 0, %s193
      %s195 = sphi 0, %s193
      %s196 = sphi 0, %s195
      %s210 = sphi 0, %s196
      %s216 = sphi 0, %s218
      %s219 = sphi 0, %s216
      %s220 = sphi 0, %s219
      %s236 = sphi 0, %s220
    $region4: #{tpu_custom_call.1} parent=1 // loop_header_branch
      %26 = sbr.rel (%p24) target = $region8
    $region5: #{tpu_custom_call.1} parent=1 // loop_body
      %s28 = ssub.s32 %s23, 1
      %s29 = ssub.s32 %s23, 2
      %s30 = sadd.s32 %s23, 1
      %s31 = ssub.s32 %s23, %s30
      %p32 = scmp.eq.s32.totalorder %s31, 0
      %s34 = sadd.s32 %s33, 1
      %s35 = scalar_select %p32, %s33, %s34
      %p38 = pneg %p32
      %p39 = scmp.eq.s32.totalorder %s23, 1
      %p40 = por %p38, %p39
      %p41 = scmp.ne.s32.totalorder %s33, %s36
      %p42 = scmp.eq.s32.totalorder %s23, 0
      %p43 = por %p41, %p42
      %p44 = scmp.ne.s32.totalorder %s33, %s36
      %p45 = scmp.eq.s32.totalorder %s28, 1
      %p46 = por %p44, %p45
      %p47 = scmp.ne.s32.totalorder %s36, %s37
      %p48 = scmp.eq.s32.totalorder %s28, 0
      %p49 = por %p47, %p48
      %p50 = scmp.ne.s32.totalorder %s36, %s37
      %p51 = scmp.eq.s32.totalorder %s29, 1
      %p52 = por %p50, %p51
      %p54 = scmp.ne.s32.totalorder %s37, %s53
      %p55 = scmp.eq.s32.totalorder %s29, 0
      %p56 = por %p54, %p55
      %s57 = ssub.s32 %s23, %s30
      %p58 = scmp.eq.s32.totalorder %s57, 0
      %s60 = sadd.s32 %s59, 1
      %s61 = scalar_select %p58, %s59, %s60
      %p64 = pneg %p58
      %p65 = scmp.eq.s32.totalorder %s23, 1
      %p66 = por %p64, %p65
      %p67 = scmp.ne.s32.totalorder %s59, %s62
      %p68 = scmp.eq.s32.totalorder %s23, 0
      %p69 = por %p67, %p68
      %p70 = scmp.ne.s32.totalorder %s59, %s62
      %p71 = scmp.eq.s32.totalorder %s28, 1
      %p72 = por %p70, %p71
      %p73 = scmp.ne.s32.totalorder %s62, %s63
      %p74 = scmp.eq.s32.totalorder %s28, 0
      %p75 = por %p73, %p74
      %p76 = scmp.ne.s32.totalorder %s62, %s63
      %p77 = scmp.eq.s32.totalorder %s29, 1
      %p78 = por %p76, %p77
      %p80 = scmp.ne.s32.totalorder %s63, %s79
      %p81 = scmp.eq.s32.totalorder %s29, 0
      %p82 = por %p80, %p81
      %s83 = ssub.s32 %s23, %s30
      %p84 = scmp.eq.s32.totalorder %s83, 0
      %s86 = sadd.s32 %s85, 1
      %s87 = scalar_select %p84, %s85, %s86
      %p90 = pneg %p84
      %p91 = scmp.eq.s32.totalorder %s23, 1
      %p92 = por %p90, %p91
      %p93 = scmp.ne.s32.totalorder %s85, %s88
      %p94 = scmp.eq.s32.totalorder %s23, 0
      %p95 = por %p93, %p94
      %p96 = scmp.ne.s32.totalorder %s85, %s88
      %p97 = scmp.eq.s32.totalorder %s28, 1
      %p98 = por %p96, %p97
      %p99 = scmp.ne.s32.totalorder %s88, %s89
      %p100 = scmp.eq.s32.totalorder %s28, 0
      %p101 = por %p99, %p100
      %p102 = scmp.ne.s32.totalorder %s88, %s89
      %p103 = scmp.eq.s32.totalorder %s29, 1
      %p104 = por %p102, %p103
      %p106 = scmp.ne.s32.totalorder %s89, %s105
      %p107 = scmp.eq.s32.totalorder %s29, 0
      %p108 = por %p106, %p107
      %s110 = sadd.s32 %s109, 1
      %p113 = scmp.eq.s32.totalorder %s23, 1
      %p114 = scmp.ne.s32.totalorder %s109, %s111
      %p115 = scmp.eq.s32.totalorder %s23, 0
      %p116 = por %p114, %p115
      %p117 = scmp.ne.s32.totalorder %s109, %s111
      %p118 = scmp.eq.s32.totalorder %s28, 1
      %p119 = por %p117, %p118
      %p120 = scmp.ne.s32.totalorder %s111, %s112
      %p121 = scmp.eq.s32.totalorder %s28, 0
      %p122 = por %p120, %p121
      %p123 = scmp.ne.s32.totalorder %s111, %s112
      %p124 = scmp.eq.s32.totalorder %s29, 1
      %p125 = por %p123, %p124
      %p127 = scmp.ne.s32.totalorder %s112, %s126
      %p128 = scmp.eq.s32.totalorder %s29, 0
      %p129 = por %p127, %p128
      %s131 = sadd.s32 %s130, 1
      %p134 = scmp.eq.s32.totalorder %s23, 1
      %p135 = scmp.ne.s32.totalorder %s130, %s132
      %p136 = scmp.eq.s32.totalorder %s23, 0
      %p137 = por %p135, %p136
      %p138 = scmp.ne.s32.totalorder %s130, %s132
      %p139 = scmp.eq.s32.totalorder %s28, 1
      %p140 = por %p138, %p139
      %p141 = scmp.ne.s32.totalorder %s132, %s133
      %p142 = scmp.eq.s32.totalorder %s28, 0
      %p143 = por %p141, %p142
      %p144 = scmp.ne.s32.totalorder %s132, %s133
      %p145 = scmp.eq.s32.totalorder %s29, 1
      %p146 = por %p144, %p145
      %p148 = scmp.ne.s32.totalorder %s133, %s147
      %p149 = scmp.eq.s32.totalorder %s29, 0
      %p150 = por %p148, %p149
      %s152 = sadd.s32 %s151, 1
      %p155 = scmp.eq.s32.totalorder %s23, 1
      %p156 = scmp.ne.s32.totalorder %s151, %s153
      %p157 = scmp.eq.s32.totalorder %s23, 0
      %p158 = por %p156, %p157
      %p159 = scmp.ne.s32.totalorder %s151, %s153
      %p160 = scmp.eq.s32.totalorder %s28, 1
      %p161 = por %p159, %p160
      %p162 = scmp.ne.s32.totalorder %s153, %s154
      %p163 = scmp.eq.s32.totalorder %s28, 0
      %p164 = por %p162, %p163
      %p165 = scmp.ne.s32.totalorder %s153, %s154
      %p166 = scmp.eq.s32.totalorder %s29, 1
      %p167 = por %p165, %p166
      %p169 = scmp.ne.s32.totalorder %s154, %s168
      %p170 = scmp.eq.s32.totalorder %s29, 0
      %p171 = por %p169, %p170
      %s173 = sadd.s32 %s172, 1
      %p176 = scmp.eq.s32.totalorder %s23, 1
      %p177 = scmp.ne.s32.totalorder %s172, %s174
      %p178 = scmp.eq.s32.totalorder %s23, 0
      %p179 = por %p177, %p178
      %p180 = scmp.ne.s32.totalorder %s172, %s174
      %p181 = scmp.eq.s32.totalorder %s28, 1
      %p182 = por %p180, %p181
      %p183 = scmp.ne.s32.totalorder %s174, %s175
      %p184 = scmp.eq.s32.totalorder %s28, 0
      %p185 = por %p183, %p184
      %p186 = scmp.ne.s32.totalorder %s174, %s175
      %p187 = scmp.eq.s32.totalorder %s29, 1
      %p188 = por %p186, %p187
      %p190 = scmp.ne.s32.totalorder %s175, %s189
      %p191 = scmp.eq.s32.totalorder %s29, 0
      %p192 = por %p190, %p191
      %s194 = sadd.s32 %s193, 1
      %p197 = scmp.eq.s32.totalorder %s23, 1
      %p198 = scmp.ne.s32.totalorder %s193, %s195
      %p199 = scmp.eq.s32.totalorder %s23, 0
      %p200 = por %p198, %p199
      %p201 = scmp.ne.s32.totalorder %s193, %s195
      %p202 = scmp.eq.s32.totalorder %s28, 1
      %p203 = por %p201, %p202
      %p204 = scmp.ne.s32.totalorder %s195, %s196
      %p205 = scmp.eq.s32.totalorder %s28, 0
      %p206 = por %p204, %p205
      %p207 = scmp.ne.s32.totalorder %s195, %s196
      %p208 = scmp.eq.s32.totalorder %s29, 1
      %p209 = por %p207, %p208
      %p211 = scmp.ne.s32.totalorder %s196, %s210
      %p212 = scmp.eq.s32.totalorder %s29, 0
      %p213 = por %p211, %p212
      %s214 = ssub.s32 %s23, %s30
      %p215 = scmp.eq.s32.totalorder %s214, 0
      %s217 = sadd.s32 %s216, 1
      %s218 = scalar_select %p215, %s216, %s217
      %p221 = pneg %p215
      %p222 = scmp.eq.s32.totalorder %s23, 1
      %p223 = por %p221, %p222
      %p224 = scmp.ne.s32.totalorder %s216, %s219
      %p225 = scmp.eq.s32.totalorder %s23, 0
      %p226 = por %p224, %p225
      %p227 = scmp.ne.s32.totalorder %s216, %s219
      %p228 = scmp.eq.s32.totalorder %s28, 1
      %p229 = por %p227, %p228
      %p230 = scmp.ne.s32.totalorder %s219, %s220
      %p231 = scmp.eq.s32.totalorder %s28, 0
      %p232 = por %p230, %p231
      %p233 = scmp.ne.s32.totalorder %s219, %s220
      %p234 = scmp.eq.s32.totalorder %s29, 1
      %p235 = por %p233, %p234
      %p237 = scmp.ne.s32.totalorder %s220, %s236
      %p238 = scmp.eq.s32.totalorder %s29, 0
      %p239 = por %p237, %p238
      %p240 = scmp.le.s32.totalorder 1, %s23
      %p241 = scmp.lt.s32.totalorder %s23, 3
      %p242 = pnand %p240, %p241
      %p243 = pneg %p242
      // Predicated region
      $region9: #{tpu_custom_call.1} parent=5 // pred_check
        _
      $region10: #{tpu_custom_call.1} parent=5 // pred_check_branch
        %245 = sbr.rel (%p242) target = $region12
      $region11: #{tpu_custom_call.1} parent=5 // pred_region
        %s246 = ssub.s32 %s23, 1
        // Predicated region
        $region13: #{tpu_custom_call.1} parent=11 // pred_check
          %p247 = pneg %p122
        $region14: #{tpu_custom_call.1} parent=11 // pred_check_branch
          %249 = sbr.rel (%p247) target = $region16
        $region15: #{tpu_custom_call.1} parent=11 // pred_region
          _
        $region16: #{tpu_custom_call.1} parent=11 // pred_fallthru
          _
        // Predicated region
        $region17: #{tpu_custom_call.1} parent=11 // pred_check
          %p250 = pneg %p143
        $region18: #{tpu_custom_call.1} parent=11 // pred_check_branch
          %252 = sbr.rel (%p250) target = $region20
        $region19: #{tpu_custom_call.1} parent=11 // pred_region
          _
        $region20: #{tpu_custom_call.1} parent=11 // pred_fallthru
          _
        // Predicated region
        $region21: #{tpu_custom_call.1} parent=11 // pred_check
          %p253 = pneg %p164
        $region22: #{tpu_custom_call.1} parent=11 // pred_check_branch
          %255 = sbr.rel (%p253) target = $region24
        $region23: #{tpu_custom_call.1} parent=11 // pred_region
          _
        $region24: #{tpu_custom_call.1} parent=11 // pred_fallthru
          _
        // Predicated region
        $region25: #{tpu_custom_call.1} parent=11 // pred_check
          %p256 = pneg %p185
        $region26: #{tpu_custom_call.1} parent=11 // pred_check_branch
          %258 = sbr.rel (%p256) target = $region28
        $region27: #{tpu_custom_call.1} parent=11 // pred_region
          _
        $region28: #{tpu_custom_call.1} parent=11 // pred_fallthru
          _
        // Predicated region
        $region29: #{tpu_custom_call.1} parent=11 // pred_check
          %p259 = pneg %p206
        $region30: #{tpu_custom_call.1} parent=11 // pred_check_branch
          %261 = sbr.rel (%p259) target = $region32
        $region31: #{tpu_custom_call.1} parent=11 // pred_region
          _
        $region32: #{tpu_custom_call.1} parent=11 // pred_fallthru
          _
      $region12: #{tpu_custom_call.1} parent=5 // pred_fallthru
        _
      %p262 = scmp.lt.s32.totalorder %s23, 2
      // Predicated region
      $region33: #{tpu_custom_call.1} parent=5 // pred_check
        %p263 = pneg %p262
      $region34: #{tpu_custom_call.1} parent=5 // pred_check_branch
        %265 = sbr.rel (%p263) target = $region36
      $region35: #{tpu_custom_call.1} parent=5 // pred_region
        // Predicated region
        $region37: #{tpu_custom_call.1} parent=35 // pred_check
          %p266 = pneg %p43
        $region38: #{tpu_custom_call.1} parent=35 // pred_check_branch
          %268 = sbr.rel (%p266) target = $region40
        $region39: #{tpu_custom_call.1} parent=35 // pred_region
          %s269 = sand.u32 %s33, 1
          %s270 = scalar_lea.sflag [#allocation4], %s269
          %s271 = sand.u32 %s33, 1
          %s272 = smul.addr %s271, 8
          %s273 = scalar_lea.vmem [#allocation3], %s272
          %275 = vsyncadd %s270, 0
          %s276 = smul.addr %s23, 8
          %s277 = scalar_lea.hbm %s0, %s276
          %s279 = sshll.u32 %s277, 4
          %s280 = int_to_ptr.hbm [resolvable:$true] %s279
          %s281 = sshll.u32 %s273, 4
          %s282 = int_to_ptr.vmem [resolvable:$true] %s281
          %284 = dma.hbm_to_vmem [thread:$0]  %s280, 128, %s282, %s270
        $region40: #{tpu_custom_call.1} parent=35 // pred_fallthru
          _
        // Predicated region
        $region41: #{tpu_custom_call.1} parent=35 // pred_check
          %p285 = pneg %p69
        $region42: #{tpu_custom_call.1} parent=35 // pred_check_branch
          %287 = sbr.rel (%p285) target = $region44
        $region43: #{tpu_custom_call.1} parent=35 // pred_region
          %s288 = sand.u32 %s23, 1
          %s289 = scalar_lea.sflag [#allocation7], %s288
          %s290 = sand.u32 %s59, 1
          %s291 = smul.addr %s290, 8
          %s292 = scalar_lea.vmem [#allocation6], %s291
          %294 = vsyncadd %s289, 0
          %s295 = smul.addr %s23, 8
          %s296 = scalar_lea.hbm %s1, %s295
          %s298 = sshll.u32 %s296, 4
          %s299 = int_to_ptr.hbm [resolvable:$true] %s298
          %s300 = sshll.u32 %s292, 4
          %s301 = int_to_ptr.vmem [resolvable:$true] %s300
          %303 = dma.hbm_to_vmem [thread:$0]  %s299, 128, %s301, %s289
        $region44: #{tpu_custom_call.1} parent=35 // pred_fallthru
          _
        // Predicated region
        $region45: #{tpu_custom_call.1} parent=35 // pred_check
          %p304 = pneg %p95
        $region46: #{tpu_custom_call.1} parent=35 // pred_check_branch
          %306 = sbr.rel (%p304) target = $region48
        $region47: #{tpu_custom_call.1} parent=35 // pred_region
          %s307 = sand.u32 %s23, 1
          %s308 = scalar_lea.sflag [#allocation7], %s307
          %s309 = sand.u32 %s85, 1
          %s310 = smul.addr %s309, 8
          %s311 = scalar_lea.vmem [#allocation8], %s310
          %313 = vsyncadd %s308, 0
          %s314 = smul.addr %s23, 8
          %s315 = scalar_lea.hbm %s2, %s314
          %s317 = sshll.u32 %s315, 4
          %s318 = int_to_ptr.hbm [resolvable:$true] %s317
          %s319 = sshll.u32 %s311, 4
          %s320 = int_to_ptr.vmem [resolvable:$true] %s319
          %322 = dma.hbm_to_vmem [thread:$0]  %s318, 128, %s320, %s308
        $region48: #{tpu_custom_call.1} parent=35 // pred_fallthru
          _
      $region36: #{tpu_custom_call.1} parent=5 // pred_fallthru
        _
      %p323 = scmp.le.s32.totalorder 1, %s23
      %p324 = scmp.lt.s32.totalorder %s23, 3
      %p325 = pnand %p323, %p324
      %p326 = pneg %p325
      // Predicated region
      $region49: #{tpu_custom_call.1} parent=5 // pred_check
        _
      $region50: #{tpu_custom_call.1} parent=5 // pred_check_branch
        %328 = sbr.rel (%p325) target = $region52
      $region51: #{tpu_custom_call.1} parent=5 // pred_region
        %s329 = ssub.s32 %s23, 1
        %s330 = sand.u32 %s36, 1
        %s331 = scalar_lea.sflag [#allocation4], %s330
        %s332 = sand.u32 %s36, 1
        %s333 = smul.addr %s332, 8
        %s334 = scalar_lea.vmem [#allocation3], %s333
        // Predicated region
        $region53: #{tpu_custom_call.1} parent=51 // pred_check
          %p335 = pneg %p49
        $region54: #{tpu_custom_call.1} parent=51 // pred_check_branch
          %337 = sbr.rel (%p335) target = $region56
        $region55: #{tpu_custom_call.1} parent=51 // pred_region
          %339 = dma.done %s331, 128
        $region56: #{tpu_custom_call.1} parent=51 // pred_fallthru
          _
        %s340 = sand.u32 %s28, 1
        %s341 = scalar_lea.sflag [#allocation7], %s340
        %s342 = sand.u32 %s62, 1
        %s343 = smul.addr %s342, 8
        %s344 = scalar_lea.vmem [#allocation6], %s343
        // Predicated region
        $region57: #{tpu_custom_call.1} parent=51 // pred_check
          %p345 = pneg %p75
        $region58: #{tpu_custom_call.1} parent=51 // pred_check_branch
          %347 = sbr.rel (%p345) target = $region60
        $region59: #{tpu_custom_call.1} parent=51 // pred_region
          %349 = dma.done %s341, 128
        $region60: #{tpu_custom_call.1} parent=51 // pred_fallthru
          _
        %s350 = sand.u32 %s28, 1
        %s351 = scalar_lea.sflag [#allocation7], %s350
        %s352 = sand.u32 %s88, 1
        %s353 = smul.addr %s352, 8
        %s354 = scalar_lea.vmem [#allocation8], %s353
        // Predicated region
        $region61: #{tpu_custom_call.1} parent=51 // pred_check
          %p355 = pneg %p101
        $region62: #{tpu_custom_call.1} parent=51 // pred_check_branch
          %357 = sbr.rel (%p355) target = $region64
        $region63: #{tpu_custom_call.1} parent=51 // pred_region
          %359 = dma.done %s351, 128
        $region64: #{tpu_custom_call.1} parent=51 // pred_fallthru
          _
        %s360 = sand.u32 %s36, 1
        %s361 = scalar_lea.sflag [#allocation4], %s360
        %s362 = sand.u32 %s36, 1
        %s363 = smul.addr %s362, 8
        %s364 = scalar_lea.vmem [#allocation3], %s363
        %p365 = pneg %p49
        %p366 = pneg %p46
        %s367 = sand.u32 %s28, 1
        %s368 = scalar_lea.sflag [#allocation7], %s367
        %s369 = sand.u32 %s62, 1
        %s370 = smul.addr %s369, 8
        %s371 = scalar_lea.vmem [#allocation6], %s370
        %p372 = pneg %p75
        %p373 = pneg %p72
        %s374 = sand.u32 %s28, 1
        %s375 = scalar_lea.sflag [#allocation7], %s374
        %s376 = sand.u32 %s88, 1
        %s377 = smul.addr %s376, 8
        %s378 = scalar_lea.vmem [#allocation8], %s377
        %p379 = pneg %p101
        %p380 = pneg %p98
        %p381 = pneg %p122
        %p382 = pneg %p119
        %p383 = pneg %p143
        %p384 = pneg %p140
        %p385 = pneg %p164
        %p386 = pneg %p161
        %p387 = pneg %p185
        %p388 = pneg %p182
        %p389 = pneg %p206
        %p390 = pneg %p203
        %p391 = pneg %p232
        %p392 = pneg %p229
        %s393 = sand.u32 %s219, 1
        %s394 = scalar_lea.sflag [#allocation5], %s393
        %s395 = sand.u32 %s219, 1
        %s396 = smul.addr %s395, 8
        %s397 = scalar_lea.vmem [#allocation9], %s396
        %v398 = vld [vmem:[%s334] sm:$0xff]
        %v399 = vld [vmem:[%s344] sm:$0xff]
        %v400 = vld [vmem:[%s354] sm:$0xff]
        %v401 = vld [vmem:[%s3] sm:$0xff]
        %v402 = vld [vmem:[%s3 + $0x8] sm:$0xff]
        %v403 = vld [vmem:[%s3 + $0x10] sm:$0xff]
        %v404 = vld [vmem:[%s3 + $0x18] sm:$0xff]
        %v405 = vmul.f32 %v401, 0.25
        %v406 = vmul.f32 %v402, 0.25
        %v407 = vmul.f32 %v403, 0.25
        %v408 = vmul.f32 %v404, 0.25
        %v409 = vld [vmem:[%s4] sm:$0xff]
        %v410 = vld [vmem:[%s4 + $0x8] sm:$0xff]
        %v411 = vld [vmem:[%s4 + $0x10] sm:$0xff]
        %v412 = vld [vmem:[%s4 + $0x18] sm:$0xff]
        %v413 = vld [vmem:[%s5] sm:$0xff]
        %v414 = vld [vmem:[%s5 + $0x8] sm:$0xff]
        %v415 = vld [vmem:[%s5 + $0x10] sm:$0xff]
        %v416 = vld [vmem:[%s5 + $0x18] sm:$0xff]
        %v417 = vld [vmem:[%s6] sm:$0xff]
        %v418 = vld [vmem:[%s6 + $0x8] sm:$0xff]
        %v419 = vld [vmem:[%s6 + $0x10] sm:$0xff]
        %v420 = vld [vmem:[%s6 + $0x18] sm:$0xff]
        %v421 = vld [vmem:[%s6 + $0x20] sm:$0xff]
        %v422 = vld [vmem:[%s6 + $0x28] sm:$0xff]
        %v423 = vld [vmem:[%s6 + $0x30] sm:$0xff]
        %v424 = vld [vmem:[%s6 + $0x38] sm:$0xff]
        %v425 = vld [vmem:[%s7] sm:$0x1]
        %vm426 = vcmask 261120
        %v428 = vsel %vm426, %v398, 0
        %430 = vmatpush.msra.mxu0 0.0
        %431 = vmatpush.msra.mxu0 0.0
        %432 = vmatpush.msra.mxu0 0.0
        %433 = vmatpush.msra.mxu0 0.0
        %434 = vmatpush.msra.mxu0 0.0
        %435 = vmatpush.msra.mxu0 0.0
        %436 = vmatpush.msra.mxu0 0.0
        %437 = vmatpush.msra.mxu0 0.0
        %438 = vmatpush.msra.mxu0 0.0
        %439 = vmatpush.msra.mxu0 0.0
        %440 = vmatpush.msra.mxu0 0.0
        %441 = vmatpush.msra.mxu0 0.0
        %442 = vmatpush.msra.mxu0 %v408
        %443 = vmatpush.msra.mxu0 %v407
        %444 = vmatpush.msra.mxu0 %v406
        %445 = vmatpush.msra.mxu0 %v405
        %446 = vmatmul.f32.gmra.mxu0 %v428
        %v447 = vpop.f32.mrf.mxu0
        %v448 = vadd.f32 0.0, %v447
        %449 = vdwg.mxu0
        %v451 = vsel %vm426, %v399, 0
        %453 = vmatpush.msra.mxu0 0.0
        %454 = vmatpush.msra.mxu0 0.0
        %455 = vmatpush.msra.mxu0 0.0
        %456 = vmatpush.msra.mxu0 0.0
        %457 = vmatpush.msra.mxu0 0.0
        %458 = vmatpush.msra.mxu0 0.0
        %459 = vmatpush.msra.mxu0 0.0
        %460 = vmatpush.msra.mxu0 0.0
        %461 = vmatpush.msra.mxu0 0.0
        %462 = vmatpush.msra.mxu0 0.0
        %463 = vmatpush.msra.mxu0 0.0
        %464 = vmatpush.msra.mxu0 0.0
        %465 = vmatpush.msra.mxu0 %v412
        %466 = vmatpush.msra.mxu0 %v411
        %467 = vmatpush.msra.mxu0 %v410
        %468 = vmatpush.msra.mxu0 %v409
        %469 = vmatmul.f32.gmra.mxu0 %v451
        %v470 = vpop.f32.mrf.mxu0
        %v471 = vadd.f32 0.0, %v470
        %472 = vdwg.mxu0
        %v474 = vsel %vm426, %v400, 0
        %476 = vmatpush.msra.mxu0 0.0
        %477 = vmatpush.msra.mxu0 0.0
        %478 = vmatpush.msra.mxu0 0.0
        %479 = vmatpush.msra.mxu0 0.0
        %480 = vmatpush.msra.mxu0 0.0
        %481 = vmatpush.msra.mxu0 0.0
        %482 = vmatpush.msra.mxu0 0.0
        %483 = vmatpush.msra.mxu0 0.0
        %484 = vmatpush.msra.mxu0 0.0
        %485 = vmatpush.msra.mxu0 0.0
        %486 = vmatpush.msra.mxu0 0.0
        %487 = vmatpush.msra.mxu0 0.0
        %488 = vmatpush.msra.mxu0 %v416
        %489 = vmatpush.msra.mxu0 %v415
        %490 = vmatpush.msra.mxu0 %v414
        %491 = vmatpush.msra.mxu0 %v413
        %492 = vmatmul.f32.gmra.mxu0 %v474
        %v493 = vpop.f32.mrf.mxu0
        %v494 = vadd.f32 0.0, %v493
        %495 = vdwg.mxu0
        %vm496 = vcmask 130048
        %v498 = vsel %vm496, %v448, 0
        %v501 = vsel %vm496, %v471, 0
        %503 = vmatpush.xpose.msra.mxu0 0.0
        %504 = vmatpush.xpose.msra.mxu0 0.0
        %505 = vmatpush.xpose.msra.mxu0 0.0
        %506 = vmatpush.xpose.msra.mxu0 0.0
        %507 = vmatpush.xpose.msra.mxu0 0.0
        %508 = vmatpush.xpose.msra.mxu0 0.0
        %509 = vmatpush.xpose.msra.mxu0 0.0
        %510 = vmatpush.xpose.msra.mxu0 0.0
        %511 = vmatpush.xpose.msra.mxu0 0.0
        %512 = vmatpush.xpose.msra.mxu0 0.0
        %513 = vmatpush.xpose.msra.mxu0 0.0
        %514 = vmatpush.xpose.msra.mxu0 0.0
        %515 = vmatpush.xpose.msra.mxu0 0.0
        %516 = vmatpush.xpose.msra.mxu0 0.0
        %517 = vmatpush.xpose.msra.mxu0 0.0
        %518 = vmatpush.xpose.msra.mxu0 %v501
        %519 = vmatmul.f32.gmra.mxu0 %v498
        %v520 = vpop.f32.mrf.mxu0
        %v521 = vadd.f32 0.0, %v520
        %522 = vdwg.mxu0
        %vm523 = vcmask 64512
        %v524 = vsel %vm523, %v521, -inf
        %525 = vmax.xlane.f32.xlu0 %v524
        %v526 = vpop.xlane.xlu0 %525
        %v527 = vsub.f32 %v521, %v526
        %v528 = vmul.f32 %v527, 1.442695
        %v529 = vpow.pop %v528
        %v530 = vsel %vm523, %v529, 0.0
        %531 = vadd.xlane.f32.xlu0 %v530
        %v532 = vpop.xlane.xlu0 %531
        %v534 = vsel %vm523, %v529, 0
        %536 = vmatpush.msra.mxu0 0.0
        %537 = vmatpush.msra.mxu0 0.0
        %538 = vmatpush.msra.mxu0 0.0
        %539 = vmatpush.msra.mxu0 0.0
        %540 = vmatpush.msra.mxu0 0.0
        %541 = vmatpush.msra.mxu0 0.0
        %542 = vmatpush.msra.mxu0 0.0
        %543 = vmatpush.msra.mxu0 0.0
        %544 = vmatpush.msra.mxu0 0.0
        %545 = vmatpush.msra.mxu0 0.0
        %546 = vmatpush.msra.mxu0 0.0
        %547 = vmatpush.msra.mxu0 0.0
        %548 = vmatpush.msra.mxu0 0.0
        %549 = vmatpush.msra.mxu0 0.0
        %550 = vmatpush.msra.mxu0 0.0
        %551 = vmatpush.msra.mxu0 %v494
        %552 = vmatmul.f32.gmra.mxu0 %v534
        %v553 = vpop.f32.mrf.mxu0
        %v554 = vadd.f32 0.0, %v553
        %555 = vdwg.mxu0
        %v556 = vrcp.pop %v532
        %v557 = vmul.f32 %v532, %v556
        %v558 = vsub.f32 1.0, %v557
        %v559 = vmul.f32 %v556, %v558
        %v560 = vadd.f32 %v556, %v559
        %vm561 = vweird.f32 %v532
        %vm562 = vweird.f32 %v556
        %vm563 = vmor %vm561, %vm562
        %v564 = vsel %vm563, %v556, %v560
        %v565 = vand.u32 2147483647, %v532
        %vm566 = vcmp.eq.f32.partialorder %v565, 8.507059e+37
        %v567 = vand.u32 %v532, 2147483648
        %v568 = vor.u32 1.1754944e-38, %v567
        %v569 = vsel %vm566, %v568, %v564
        %v570 = vmul.f32 %v554, %v569
        %571 = vst.msk [vmem:[#allocation2] sm:$0xff] %vm496, %v570
        %572 = vrot.lane.b32.xlu0 %v448, 112
        %v573 = vpop.permute.xlu0 %572
        %574 = vrot.lane.b32.xlu0 %v471, 112
        %v575 = vpop.permute.xlu0 %574
        %v576 = vsel %vm496, %v573, 0
        %v578 = vsel %vm496, %v575, 0
        %580 = vmatpush.xpose.msra.mxu0 0.0
        %581 = vmatpush.xpose.msra.mxu0 0.0
        %582 = vmatpush.xpose.msra.mxu0 0.0
        %583 = vmatpush.xpose.msra.mxu0 0.0
        %584 = vmatpush.xpose.msra.mxu0 0.0
        %585 = vmatpush.xpose.msra.mxu0 0.0
        %586 = vmatpush.xpose.msra.mxu0 0.0
        %587 = vmatpush.xpose.msra.mxu0 0.0
        %588 = vmatpush.xpose.msra.mxu0 0.0
        %589 = vmatpush.xpose.msra.mxu0 0.0
        %590 = vmatpush.xpose.msra.mxu0 0.0
        %591 = vmatpush.xpose.msra.mxu0 0.0
        %592 = vmatpush.xpose.msra.mxu0 0.0
        %593 = vmatpush.xpose.msra.mxu0 0.0
        %594 = vmatpush.xpose.msra.mxu0 0.0
        %595 = vmatpush.xpose.msra.mxu0 %v578
        %596 = vmatmul.f32.gmra.mxu0 %v576
        %v597 = vpop.f32.mrf.mxu0
        %v598 = vadd.f32 0.0, %v597
        %599 = vdwg.mxu0
        %v600 = vsel %vm523, %v598, -inf
        %601 = vmax.xlane.f32.xlu0 %v600
        %v602 = vpop.xlane.xlu0 %601
        %v603 = vsub.f32 %v598, %v602
        %v604 = vmul.f32 %v603, 1.442695
        %v605 = vpow.pop %v604
        %v606 = vsel %vm523, %v605, 0.0
        %607 = vadd.xlane.f32.xlu0 %v606
        %v608 = vpop.xlane.xlu0 %607
        %610 = vrot.lane.b32.xlu0 %v494, 112
        %v611 = vpop.permute.xlu0 %610
        %v614 = vsel %vm523, %v605, 0
        %616 = vmatpush.msra.mxu0 0.0
        %617 = vmatpush.msra.mxu0 0.0
        %618 = vmatpush.msra.mxu0 0.0
        %619 = vmatpush.msra.mxu0 0.0
        %620 = vmatpush.msra.mxu0 0.0
        %621 = vmatpush.msra.mxu0 0.0
        %622 = vmatpush.msra.mxu0 0.0
        %623 = vmatpush.msra.mxu0 0.0
        %624 = vmatpush.msra.mxu0 0.0
        %625 = vmatpush.msra.mxu0 0.0
        %626 = vmatpush.msra.mxu0 0.0
        %627 = vmatpush.msra.mxu0 0.0
        %628 = vmatpush.msra.mxu0 0.0
        %629 = vmatpush.msra.mxu0 0.0
        %630 = vmatpush.msra.mxu0 0.0
        %631 = vmatpush.msra.mxu0 %v611
        %632 = vmatmul.f32.gmra.mxu0 %v614
        %v633 = vpop.f32.mrf.mxu0
        %v634 = vadd.f32 0.0, %v633
        %635 = vdwg.mxu0
        %v636 = vrcp.pop %v608
        %v637 = vmul.f32 %v608, %v636
        %v638 = vsub.f32 1.0, %v637
        %v639 = vmul.f32 %v636, %v638
        %v640 = vadd.f32 %v636, %v639
        %vm641 = vweird.f32 %v608
        %vm642 = vweird.f32 %v636
        %vm643 = vmor %vm641, %vm642
        %v644 = vsel %vm643, %v636, %v640
        %v645 = vand.u32 2147483647, %v608
        %vm646 = vcmp.eq.f32.partialorder %v645, 8.507059e+37
        %v647 = vand.u32 %v608, 2147483648
        %v648 = vor.u32 1.1754944e-38, %v647
        %v649 = vsel %vm646, %v648, %v644
        %v650 = vmul.f32 %v634, %v649
        %652 = vrot.lane.b32.xlu0 %v650, 16
        %v653 = vpop.permute.xlu0 %652
        %vm655 = vcmask 261248
        %656 = vst.msk [vmem:[#allocation2] sm:$0xff] %vm655, %v653
        %657 = vrot.lane.b32.xlu0 %v448, 96
        %v658 = vpop.permute.xlu0 %657
        %659 = vrot.lane.b32.xlu0 %v471, 96
        %v660 = vpop.permute.xlu0 %659
        %v661 = vsel %vm496, %v658, 0
        %v663 = vsel %vm496, %v660, 0
        %665 = vmatpush.xpose.msra.mxu0 0.0
        %666 = vmatpush.xpose.msra.mxu0 0.0
        %667 = vmatpush.xpose.msra.mxu0 0.0
        %668 = vmatpush.xpose.msra.mxu0 0.0
        %669 = vmatpush.xpose.msra.mxu0 0.0
        %670 = vmatpush.xpose.msra.mxu0 0.0
        %671 = vmatpush.xpose.msra.mxu0 0.0
        %672 = vmatpush.xpose.msra.mxu0 0.0
        %673 = vmatpush.xpose.msra.mxu0 0.0
        %674 = vmatpush.xpose.msra.mxu0 0.0
        %675 = vmatpush.xpose.msra.mxu0 0.0
        %676 = vmatpush.xpose.msra.mxu0 0.0
        %677 = vmatpush.xpose.msra.mxu0 0.0
        %678 = vmatpush.xpose.msra.mxu0 0.0
        %679 = vmatpush.xpose.msra.mxu0 0.0
        %680 = vmatpush.xpose.msra.mxu0 %v663
        %681 = vmatmul.f32.gmra.mxu0 %v661
        %v682 = vpop.f32.mrf.mxu0
        %v683 = vadd.f32 0.0, %v682
        %684 = vdwg.mxu0
        %v685 = vsel %vm523, %v683, -inf
        %686 = vmax.xlane.f32.xlu0 %v685
        %v687 = vpop.xlane.xlu0 %686
        %v688 = vsub.f32 %v683, %v687
        %v689 = vmul.f32 %v688, 1.442695
        %v690 = vpow.pop %v689
        %v691 = vsel %vm523, %v690, 0.0
        %692 = vadd.xlane.f32.xlu0 %v691
        %v693 = vpop.xlane.xlu0 %692
        %694 = vrot.lane.b32.xlu0 %v494, 96
        %v695 = vpop.permute.xlu0 %694
        %v698 = vsel %vm523, %v690, 0
        %700 = vmatpush.msra.mxu0 0.0
        %701 = vmatpush.msra.mxu0 0.0
        %702 = vmatpush.msra.mxu0 0.0
        %703 = vmatpush.msra.mxu0 0.0
        %704 = vmatpush.msra.mxu0 0.0
        %705 = vmatpush.msra.mxu0 0.0
        %706 = vmatpush.msra.mxu0 0.0
        %707 = vmatpush.msra.mxu0 0.0
        %708 = vmatpush.msra.mxu0 0.0
        %709 = vmatpush.msra.mxu0 0.0
        %710 = vmatpush.msra.mxu0 0.0
        %711 = vmatpush.msra.mxu0 0.0
        %712 = vmatpush.msra.mxu0 0.0
        %713 = vmatpush.msra.mxu0 0.0
        %714 = vmatpush.msra.mxu0 0.0
        %715 = vmatpush.msra.mxu0 %v695
        %716 = vmatmul.f32.gmra.mxu0 %v698
        %v717 = vpop.f32.mrf.mxu0
        %v718 = vadd.f32 0.0, %v717
        %719 = vdwg.mxu0
        %v720 = vrcp.pop %v693
        %v721 = vmul.f32 %v693, %v720
        %v722 = vsub.f32 1.0, %v721
        %v723 = vmul.f32 %v720, %v722
        %v724 = vadd.f32 %v720, %v723
        %vm725 = vweird.f32 %v693
        %vm726 = vweird.f32 %v720
        %vm727 = vmor %vm725, %vm726
        %v728 = vsel %vm727, %v720, %v724
        %v729 = vand.u32 2147483647, %v693
        %vm730 = vcmp.eq.f32.partialorder %v729, 8.507059e+37
        %v731 = vand.u32 %v693, 2147483648
        %v732 = vor.u32 1.1754944e-38, %v731
        %v733 = vsel %vm730, %v732, %v728
        %v734 = vmul.f32 %v718, %v733
        %736 = vrot.lane.b32.xlu0 %v734, 32
        %v737 = vpop.permute.xlu0 %736
        %vm739 = vcmask 392448
        %740 = vst.msk [vmem:[#allocation2] sm:$0xff] %vm739, %v737
        %741 = vrot.lane.b32.xlu0 %v448, 80
        %v742 = vpop.permute.xlu0 %741
        %743 = vrot.lane.b32.xlu0 %v471, 80
        %v744 = vpop.permute.xlu0 %743
        %v745 = vsel %vm496, %v742, 0
        %v747 = vsel %vm496, %v744, 0
        %749 = vmatpush.xpose.msra.mxu0 0.0
        %750 = vmatpush.xpose.msra.mxu0 0.0
        %751 = vmatpush.xpose.msra.mxu0 0.0
        %752 = vmatpush.xpose.msra.mxu0 0.0
        %753 = vmatpush.xpose.msra.mxu0 0.0
        %754 = vmatpush.xpose.msra.mxu0 0.0
        %755 = vmatpush.xpose.msra.mxu0 0.0
        %756 = vmatpush.xpose.msra.mxu0 0.0
        %757 = vmatpush.xpose.msra.mxu0 0.0
        %758 = vmatpush.xpose.msra.mxu0 0.0
        %759 = vmatpush.xpose.msra.mxu0 0.0
        %760 = vmatpush.xpose.msra.mxu0 0.0
        %761 = vmatpush.xpose.msra.mxu0 0.0
        %762 = vmatpush.xpose.msra.mxu0 0.0
        %763 = vmatpush.xpose.msra.mxu0 0.0
        %764 = vmatpush.xpose.msra.mxu0 %v747
        %765 = vmatmul.f32.gmra.mxu0 %v745
        %v766 = vpop.f32.mrf.mxu0
        %v767 = vadd.f32 0.0, %v766
        %768 = vdwg.mxu0
        %v769 = vsel %vm523, %v767, -inf
        %770 = vmax.xlane.f32.xlu0 %v769
        %v771 = vpop.xlane.xlu0 %770
        %v772 = vsub.f32 %v767, %v771
        %v773 = vmul.f32 %v772, 1.442695
        %v774 = vpow.pop %v773
        %v775 = vsel %vm523, %v774, 0.0
        %776 = vadd.xlane.f32.xlu0 %v775
        %v777 = vpop.xlane.xlu0 %776
        %778 = vrot.lane.b32.xlu0 %v494, 80
        %v779 = vpop.permute.xlu0 %778
        %v782 = vsel %vm523, %v774, 0
        %784 = vmatpush.msra.mxu0 0.0
        %785 = vmatpush.msra.mxu0 0.0
        %786 = vmatpush.msra.mxu0 0.0
        %787 = vmatpush.msra.mxu0 0.0
        %788 = vmatpush.msra.mxu0 0.0
        %789 = vmatpush.msra.mxu0 0.0
        %790 = vmatpush.msra.mxu0 0.0
        %791 = vmatpush.msra.mxu0 0.0
        %792 = vmatpush.msra.mxu0 0.0
        %793 = vmatpush.msra.mxu0 0.0
        %794 = vmatpush.msra.mxu0 0.0
        %795 = vmatpush.msra.mxu0 0.0
        %796 = vmatpush.msra.mxu0 0.0
        %797 = vmatpush.msra.mxu0 0.0
        %798 = vmatpush.msra.mxu0 0.0
        %799 = vmatpush.msra.mxu0 %v779
        %800 = vmatmul.f32.gmra.mxu0 %v782
        %v801 = vpop.f32.mrf.mxu0
        %v802 = vadd.f32 0.0, %v801
        %803 = vdwg.mxu0
        %v804 = vrcp.pop %v777
        %v805 = vmul.f32 %v777, %v804
        %v806 = vsub.f32 1.0, %v805
        %v807 = vmul.f32 %v804, %v806
        %v808 = vadd.f32 %v804, %v807
        %vm809 = vweird.f32 %v777
        %vm810 = vweird.f32 %v804
        %vm811 = vmor %vm809, %vm810
        %v812 = vsel %vm811, %v804, %v808
        %v813 = vand.u32 2147483647, %v777
        %vm814 = vcmp.eq.f32.partialorder %v813, 8.507059e+37
        %v815 = vand.u32 %v777, 2147483648
        %v816 = vor.u32 1.1754944e-38, %v815
        %v817 = vsel %vm814, %v816, %v812
        %v818 = vmul.f32 %v802, %v817
        %820 = vrot.lane.b32.xlu0 %v818, 48
        %v821 = vpop.permute.xlu0 %820
        %vm823 = vcmask 523648
        %824 = vst.msk [vmem:[#allocation2] sm:$0xff] %vm823, %v821
        %v825 = vld [vmem:[#allocation2] sm:$0xff]
        %v827 = vperm.slane %v425, 0
        %vm829 = vcmask 523264
        %v831 = vsel %vm829, %v825, 0
        %833 = vmatpush.msra.mxu0 0.0
        %834 = vmatpush.msra.mxu0 0.0
        %835 = vmatpush.msra.mxu0 0.0
        %836 = vmatpush.msra.mxu0 0.0
        %837 = vmatpush.msra.mxu0 0.0
        %838 = vmatpush.msra.mxu0 0.0
        %839 = vmatpush.msra.mxu0 0.0
        %840 = vmatpush.msra.mxu0 0.0
        %841 = vmatpush.msra.mxu0 %v424
        %842 = vmatpush.msra.mxu0 %v423
        %843 = vmatpush.msra.mxu0 %v422
        %844 = vmatpush.msra.mxu0 %v421
        %845 = vmatpush.msra.mxu0 %v420
        %846 = vmatpush.msra.mxu0 %v419
        %847 = vmatpush.msra.mxu0 %v418
        %848 = vmatpush.msra.mxu0 %v417
        %849 = vmatmul.f32.gmra.mxu0 %v831
        %v850 = vpop.f32.mrf.mxu0
        %v851 = vadd.f32 %v827, %v850
        %852 = vdwg.mxu0
        %853 = vst.msk [vmem:[%s397] sm:$0xff] %vm426, %v851
        %s854 = sand.u32 %s219, 1
        %s855 = scalar_lea.sflag [#allocation5], %s854
        %s856 = sand.u32 %s219, 1
        %s857 = smul.addr %s856, 8
        %s858 = scalar_lea.vmem [#allocation9], %s857
        // Predicated region
        $region65: #{tpu_custom_call.1} parent=51 // pred_check
          %p859 = pneg %p229
        $region66: #{tpu_custom_call.1} parent=51 // pred_check_branch
          %861 = sbr.rel (%p859) target = $region68
        $region67: #{tpu_custom_call.1} parent=51 // pred_region
          %863 = vsyncadd %s855, 0
          %s864 = smul.addr %s28, 8
          %s865 = scalar_lea.hbm %s8, %s864
          %s867 = sshll.u32 %s858, 4
          %s868 = int_to_ptr.vmem [resolvable:$true] %s867
          %s869 = sshll.u32 %s865, 4
          %s870 = int_to_ptr.hbm [resolvable:$true] %s869
          %872 = dma.vmem_to_hbm [thread:$0]  %s868, 128, %s870, %s855
        $region68: #{tpu_custom_call.1} parent=51 // pred_fallthru
          _
      $region52: #{tpu_custom_call.1} parent=5 // pred_fallthru
        _
      %p873 = scmp.le.s32.totalorder 2, %s23
      // Predicated region
      $region69: #{tpu_custom_call.1} parent=5 // pred_check
        %p874 = pneg %p873
      $region70: #{tpu_custom_call.1} parent=5 // pred_check_branch
        %876 = sbr.rel (%p874) target = $region72
      $region71: #{tpu_custom_call.1} parent=5 // pred_region
        %s877 = ssub.s32 %s23, 2
        // Predicated region
        $region73: #{tpu_custom_call.1} parent=71 // pred_check
          %p878 = pneg %p235
        $region74: #{tpu_custom_call.1} parent=71 // pred_check_branch
          %880 = sbr.rel (%p878) target = $region76
        $region75: #{tpu_custom_call.1} parent=71 // pred_region
          %s881 = sand.u32 %s220, 1
          %s882 = scalar_lea.sflag [#allocation5], %s881
          %s883 = sand.u32 %s220, 1
          %s884 = smul.addr %s883, 8
          %s885 = scalar_lea.vmem [#allocation9], %s884
          %887 = dma.done %s882, 128
        $region76: #{tpu_custom_call.1} parent=71 // pred_fallthru
          _
      $region72: #{tpu_custom_call.1} parent=5 // pred_fallthru
        _
    $region6: #{tpu_custom_call.1} parent=1 // loop_footer
      %s27 = sadd.s32 1, %s23
    $region7: #{tpu_custom_call.1} parent=1 // loop_footer_branch
      %22 = sbr.rel target = $region3
    $region8: #{tpu_custom_call.1} parent=1 // loop_exit
      _
    %888 = vsyncpa [#allocation4], 1
    %s889 = scalar_lea.sflag [#allocation4], 1
    %890 = vsyncpa %s889, 1
    %891 = vsyncpa [#allocation7], 1
    %s892 = scalar_lea.sflag [#allocation7], 1
    %893 = vsyncpa %s892, 1
    %894 = vsyncpa [#allocation5], 1
    %s895 = scalar_lea.sflag [#allocation5], 1
    %896 = vsyncpa %s895, 1

</llo_original>
